<compile_context>
chip_gen: v7x
topology: tpu7x:2x2x1
jax: 0.10.0
libtpu: 0.0.40
codegen_flags: <defaults>
</compile_context>

<pallas_src>
import functools

import jax
import jax.numpy as jnp
from jax.experimental import pallas as pl
from jax.experimental.pallas import tpu as pltpu

_LANE_COLS = 1024      # lane-dense last dim (multiple of 128, wide -> unmasked vst)
_TILE_ROWS = 512       # 512 * 1024 * 4B = 2 MiB f32 per tile (85%+ of HBM roofline)


def _solarize_add_kernel(x_ref, o_ref, *, addition, threshold, max_val):
    x = x_ref[...]
    # Solarize-add: only pixels below the threshold get the (clamped) addition.
    added = jnp.clip(x + addition, 0.0, max_val)
    o_ref[...] = jnp.where(x < threshold, added, x)


def _solarize_add_pallas(image, *, addition, threshold, max_val):
    """Elementwise solarize-add over an arbitrary-shaped float32 image."""
    orig_shape = image.shape
    total = image.size

    # Flatten to a lane-dense 2-D slab [rows, _LANE_COLS], padding as needed.
    flat = image.reshape(-1)
    padded_total = pl.cdiv(total, _LANE_COLS) * _LANE_COLS
    if padded_total != total:
        flat = jnp.pad(flat, (0, padded_total - total))
    rows = padded_total // _LANE_COLS

    if rows <= _TILE_ROWS:
        tile_rows = rows                      # single block == full extent (always legal)
    else:
        tile_rows = _TILE_ROWS                # multiple of 8 -> (8,128) constraint OK
        padded_rows = pl.cdiv(rows, tile_rows) * tile_rows
        if padded_rows != rows:
            flat = jnp.pad(flat, (0, (padded_rows - rows) * _LANE_COLS))
            rows = padded_rows

    x2d = flat.reshape(rows, _LANE_COLS)
    grid = (rows // tile_rows,)

    kernel = functools.partial(
        _solarize_add_kernel,
        addition=float(addition),
        threshold=float(threshold),
        max_val=float(max_val),
    )

    out2d = pl.pallas_call(
        kernel,
        out_shape=jax.ShapeDtypeStruct((rows, _LANE_COLS), image.dtype),
        grid=grid,
        in_specs=[pl.BlockSpec((tile_rows, _LANE_COLS), lambda i: (i, 0))],
        out_specs=pl.BlockSpec((tile_rows, _LANE_COLS), lambda i: (i, 0)),
        compiler_params=pltpu.CompilerParams(
            dimension_semantics=("parallel",)  # shard row tiles across TCs (v7x megacore)
        ),
    )(x2d)

    return out2d.reshape(-1)[:total].reshape(orig_shape)


@functools.partial(jax.jit, static_argnames=("p", "addition", "threshold", "max_val"))
def solarize_add_forward(image, bboxs, key, *, p, addition, threshold=128, max_val=255.0):
    """image: [N, C, H, W] float32 with pixel values in [0, max_val]; bboxs untouched."""
    # One uniform draw, like torch.rand(1); the no-op branch skips the kernel entirely.
    coin = jax.random.uniform(key, ())
    apply_aug = coin < p

    out_image = jax.lax.cond(
        apply_aug,
        lambda img: _solarize_add_pallas(
            img, addition=addition, threshold=threshold, max_val=max_val),
        lambda img: img,
        image,
    )
    return out_image, bboxs


if __name__ == "__main__":
    key = jax.random.PRNGKey(0)
    k_img, k_box, k_coin = jax.random.split(key, 3)

    # Small deterministic inputs consistent with the module's forward.
    # Pixel values in [0, 255] (float image on the 0~255 scale; threshold=128 applies directly).
    image = jax.random.uniform(k_img, (2, 4, 16, 16), dtype=jnp.float32,
                               minval=0.0, maxval=255.0)  # NCHW
    bboxs = jax.random.uniform(k_box, (2, 3, 4), dtype=jnp.float32)  # passed through untouched

    p = 0.5
    addition = 30          # integer, per the module contract
    threshold = 128
    max_val = 255.0

    out_img, out_boxes = solarize_add_forward(
        image, bboxs, k_coin, p=p, addition=addition, threshold=threshold, max_val=max_val)
    jax.block_until_ready(out_img)
    jax.block_until_ready(out_boxes)

    # Reference check (plain JAX) for the branch actually taken.
    coin = jax.random.uniform(k_coin, ())
    if bool(coin < p):
        added = jnp.clip(image + float(addition), 0.0, max_val)
        ref = jnp.where(image < float(threshold), added, image)
    else:
        ref = image
    assert jnp.allclose(out_img, ref, atol=1e-6)
    assert jnp.array_equal(out_boxes, bboxs)

    print("KERNEL_OK")
</pallas_src>

<mosaic_0001>
module attributes {stable_mosaic.version = 11 : i64} {
  func.func @_solarize_add_kernel(%arg0: i32, %arg1: memref<2x1024xf32, #tpu.memory_space<vmem>>, %arg2: memref<2x1024xf32, #tpu.memory_space<vmem>>) attributes {dimension_semantics = [#tpu.dimension_semantics<parallel>], iteration_bounds = array<i64: 1>, scalar_prefetch = 0 : i64, scratch_operands = 0 : i64, tpu.core_type = #tpu.core_type<tc>, window_params = [{transform_indices = @transform_0, window_bounds = array<i64: 2, 1024>}, {transform_indices = @transform_1, window_bounds = array<i64: 2, 1024>}]} {
    %c0 = arith.constant 0 : index
    %c0_0 = arith.constant 0 : index
    %0 = vector.load %arg1[%c0, %c0_0] : memref<2x1024xf32, #tpu.memory_space<vmem>>, vector<2x1024xf32>
    %cst = arith.constant 3.000000e+01 : f32
    %1 = vector.broadcast %cst : f32 to vector<2x1024xf32>
    %2 = arith.addf %0, %1 : vector<2x1024xf32>
    %cst_1 = arith.constant 0.000000e+00 : f32
    %cst_2 = arith.constant 2.550000e+02 : f32
    %3 = vector.broadcast %cst_1 : f32 to vector<2x1024xf32>
    %4 = arith.maximumf %3, %2 : vector<2x1024xf32>
    %5 = vector.broadcast %cst_2 : f32 to vector<2x1024xf32>
    %6 = arith.minimumf %5, %4 : vector<2x1024xf32>
    %cst_3 = arith.constant 1.280000e+02 : f32
    %7 = vector.broadcast %cst_3 : f32 to vector<2x1024xf32>
    %8 = arith.cmpf olt, %0, %7 : vector<2x1024xf32>
    %9 = arith.select %8, %6, %0 : vector<2x1024xi1>, vector<2x1024xf32>
    %c0_4 = arith.constant 0 : index
    %c0_5 = arith.constant 0 : index
    %10 = vector.load %arg2[%c0_4, %c0_5] : memref<2x1024xf32, #tpu.memory_space<vmem>>, vector<2x1024xf32>
    tpu.vector_store %arg2[%c0_4, %c0_5], %9 {strides = array<i32>} : memref<2x1024xf32, #tpu.memory_space<vmem>>, vector<2x1024xf32>,
    return
  }
  func.func @transform_0(%arg0: i32) -> (i32, i32) {
    %c0_i32 = arith.constant 0 : i32
    %c0_i32_0 = arith.constant 0 : i32
    return %arg0, %c0_i32 : i32, i32
  }
  func.func @transform_1(%arg0: i32) -> (i32, i32) {
    %c0_i32 = arith.constant 0 : i32
    %c0_i32_0 = arith.constant 0 : i32
    return %arg0, %c0_i32 : i32, i32
  }
}

</mosaic_0001>

<llo_original>
// kernel: branch_1_fun.1
$region0: #{branch_1_fun.1}
  #allocation0 [shape = 'u32[]', space=smem, size = 0x4, offset = 0x4, fixed_abs, tag = 'smem constant byte address 0x4 - core index']
  #allocation1 [shape = 'u32[144,128]{1,0:T(1,128)}', space=vmem, size = 0x12000, scoped, tag = 'internal scratch']
  %s0 = inlined_call_operand.vmem [shape: f32[2,1024], index: 0, kind: input, shape index: {}]
  %s1 = inlined_call_operand.vmem [shape: f32[2,1024], index: 1, kind: output, shape index: {}]
  %s2 = sld [smem:[#allocation0]]
  $region14: #{branch_1_fun.1} parent=0
    _
  %s4 = ssub.s32 1, %s2
  %s5 = scalar_select 0, %s4, %s2
  // Predicated region
  $region2: #{branch_1_fun.1} parent=0 // pred_check
    _
  $region3: #{branch_1_fun.1} parent=0 // pred_check_branch
    %7 = sbr.rel (0) target = $region5
  $region4: #{branch_1_fun.1} parent=0 // pred_region
    _
  $region5: #{branch_1_fun.1} parent=0 // pred_fallthru
    _
  %v8 = vld [vmem:[%s0] sm:$0xff]
  %v9 = vld [vmem:[%s0 + $0x8] sm:$0xff]
  %v10 = vadd.f32 %v8, 30.0
  %v11 = vadd.f32 %v9, 30.0
  %v12 = vmax.f32 %v10, 0.0
  %v13 = vmax.f32 %v11, 0.0
  %v14 = vmin.f32 %v12, 255.0
  %v15 = vmin.f32 %v13, 255.0
  %vm16 = vcmp.lt.f32.partialorder %v8, 128.0
  %vm17 = vcmp.lt.f32.partialorder %v9, 128.0
  %v18 = vsel %vm16, %v14, %v8
  %v19 = vsel %vm17, %v15, %v9
  %20 = vst [vmem:[%s1] sm:$0xff] %v18
  %21 = vst [vmem:[%s1 + $0x8] sm:$0xff] %v19
  // Predicated region
  $region6: #{branch_1_fun.1} parent=0 // pred_check
    _
  $region7: #{branch_1_fun.1} parent=0 // pred_check_branch
    %23 = sbr.rel (0) target = $region9
  $region8: #{branch_1_fun.1} parent=0 // pred_region
    _
  $region9: #{branch_1_fun.1} parent=0 // pred_fallthru
    _
  // Predicated region
  $region10: #{branch_1_fun.1} parent=0 // pred_check
    _
  $region11: #{branch_1_fun.1} parent=0 // pred_check_branch
    %25 = sbr.rel (0) target = $region13
  $region12: #{branch_1_fun.1} parent=0 // pred_region
    _
  $region13: #{branch_1_fun.1} parent=0 // pred_fallthru
    _

</llo_original>
